<compile_context>
chip_gen: v7x
topology: tpu7x:2x2x1
jax: 0.10.0
libtpu: 0.0.40
codegen_flags: <defaults>
</compile_context>

<pallas_src>
import jax
import jax.numpy as jnp
from jax.experimental import pallas as pl
from jax.experimental.pallas import tpu as pltpu

LANE = 128  # TPU lane width; padded hidden/output-N dims are multiples of this.


def _round_up(v, m):
    return (v + m - 1) // m * m


def simplenet_kernel(x_ref, w0_ref, b0_ref, w1_ref, b1_ref, wo_ref, bo_ref, out_ref):
    # hidden layer 0: sigmoid(x @ W0 + b0)    x: (bt, 40), W0: (40, 128)
    h = jnp.dot(x_ref[...], w0_ref[...], preferred_element_type=jnp.float32)
    h = jax.nn.sigmoid(h + b0_ref[...])
    # hidden layer 1: sigmoid(h @ W1 + b1)    W1: (128, 128)
    h = jnp.dot(h, w1_ref[...], preferred_element_type=jnp.float32)
    h = jax.nn.sigmoid(h + b1_ref[...])
    # NOTE: layers[2] is intentionally skipped (forward loops over layers[:-1]).
    # output layer: logits = h @ Wo + bo      (output_type == 'logit' -> no softmax)
    logits = jnp.dot(h, wo_ref[...], preferred_element_type=jnp.float32)
    logits = logits + bo_ref[...]
    # Store only the logical output columns (masked store, tiny writeback).
    n_out = out_ref.shape[-1]
    out_ref[...] = logits[:, :n_out].astype(out_ref.dtype)


def _pad_weight(w, rows, cols):
    return jnp.zeros((rows, cols), w.dtype).at[: w.shape[0], : w.shape[1]].set(w)


def _pad_bias(b, cols):
    return jnp.zeros((1, cols), b.dtype).at[:, : b.shape[1]].set(b)


def simplenet_forward(x, params, *, block_rows=2048):
    """Run the SimpleNet forward pass.  x: (batch, n_input) f32 -> (batch, 4) f32.

    x and the output stay at their logical feature widths in HBM; only the
    (VMEM-resident) weights are lane-padded.  Batch is tiled with a 1-D
    "parallel" grid; the last tile may be ragged (no batch padding copy).
    """
    w0, b0, w1, b1, wo, bo = params
    batch, n_in = x.shape
    hid = w0.shape[1]
    n_out = wo.shape[1]

    hid_p = _round_up(hid, LANE)
    out_p = _round_up(n_out, LANE)

    # Pad only the N (output-lane) side of w0; pad K rows of w1/wo to the padded
    # hidden width (zero rows neutralize the sigmoid(0)=0.5 padded-lane values).
    w0p = _pad_weight(w0, n_in, hid_p)
    b0p = _pad_bias(b0, hid_p)
    w1p = _pad_weight(w1, hid_p, hid_p)
    b1p = _pad_bias(b1, hid_p)
    wop = _pad_weight(wo, hid_p, out_p)
    bop = _pad_bias(bo, out_p)

    # Batch tile: sublane-aligned, capped for v7x VMEM; no batch padding copy.
    bt = min(block_rows, 8192, _round_up(batch, 8))
    # Prefer >= 2 grid steps so the ("parallel",) axis shards across both v7x
    # TensorCores (harmless on 1-TC v5e/v6e).
    if batch >= 16 and pl.cdiv(batch, bt) < 2:
        bt = _round_up(pl.cdiv(batch, 2), 8)
    grid = (pl.cdiv(batch, bt),)

    resident = lambda shape: pl.BlockSpec(shape, lambda i: (0, 0))

    out = pl.pallas_call(
        simplenet_kernel,
        out_shape=jax.ShapeDtypeStruct((batch, n_out), jnp.float32),
        grid=grid,
        in_specs=[
            pl.BlockSpec((bt, n_in), lambda i: (i, 0)),   # x streamed, unpadded features
            resident(w0p.shape), resident(b0p.shape),     # weights: VMEM-resident
            resident(w1p.shape), resident(b1p.shape),
            resident(wop.shape), resident(bop.shape),
        ],
        out_specs=pl.BlockSpec((bt, n_out), lambda i: (i, 0)),  # logical 4-col output
        compiler_params=pltpu.CompilerParams(
            dimension_semantics=("parallel",)
        ),
    )(x, w0p, b0p, w1p, b1p, wop, bop)

    return out


def init_params(key, n_input=40, hidden=80, n_out=4):
    """Deterministic synthetic init (PyTorch Linear-style uniform fan-in bounds).

    Weights stored as (in, out); biases as (1, out).
    """
    ks = jax.random.split(key, 6)

    def linear(kw, kb, fan_in, fan_out):
        bound = 1.0 / jnp.sqrt(jnp.float32(fan_in))
        w = jax.random.uniform(kw, (fan_in, fan_out), jnp.float32, -bound, bound)
        b = jax.random.uniform(kb, (1, fan_out), jnp.float32, -bound, bound)
        return w, b

    w0, b0 = linear(ks[0], ks[1], n_input, hidden)   # layers[0]
    w1, b1 = linear(ks[2], ks[3], hidden, hidden)    # layers[1]
    # layers[2] would be another (hidden, hidden) Linear, but forward() never
    # applies it, so it is not materialized here.
    wo, bo = linear(ks[4], ks[5], hidden, n_out)     # output
    return w0, b0, w1, b1, wo, bo


def simplenet_ref(x, params):
    """Plain-JAX reference of the same forward pass (for a sanity check)."""
    w0, b0, w1, b1, wo, bo = params
    h = jax.nn.sigmoid(x @ w0 + b0)
    h = jax.nn.sigmoid(h @ w1 + b1)
    return h @ wo + bo


if __name__ == "__main__":
    key = jax.random.PRNGKey(0)
    k_params, k_x1, k_x2 = jax.random.split(key, 3)

    n_input, hidden, n_out = 40, 80, 4
    params = init_params(k_params, n_input=n_input, hidden=hidden, n_out=n_out)

    # Small batch (single grid step, no ragged tile).
    batch = 8
    x = jax.random.normal(k_x1, (batch, n_input), dtype=jnp.float32)
    out = jax.block_until_ready(simplenet_forward(x, params))
    ref = simplenet_ref(x, params)
    assert out.shape == (batch, n_out)
    assert jnp.allclose(out, ref, atol=1e-5, rtol=1e-5)

    # Larger batch exercising the multi-step parallel grid with a ragged last
    # tile (100 is not a multiple of 32; no batch padding copy is made).
    batch2 = 100
    x2 = jax.random.normal(k_x2, (batch2, n_input), dtype=jnp.float32)
    out2 = jax.block_until_ready(simplenet_forward(x2, params, block_rows=32))
    ref2 = simplenet_ref(x2, params)
    assert out2.shape == (batch2, n_out)
    assert jnp.allclose(out2, ref2, atol=1e-5, rtol=1e-5)

    print("KERNEL_OK")
</pallas_src>

<mosaic_0001>
module attributes {stable_mosaic.version = 11 : i64} {
  func.func @simplenet_kernel(%arg0: i32, %arg1: memref<8x40xf32, #tpu.memory_space<vmem>>, %arg2: memref<40x128xf32, #tpu.memory_space<vmem>>, %arg3: memref<1x128xf32, #tpu.memory_space<vmem>>, %arg4: memref<128x128xf32, #tpu.memory_space<vmem>>, %arg5: memref<1x128xf32, #tpu.memory_space<vmem>>, %arg6: memref<128x128xf32, #tpu.memory_space<vmem>>, %arg7: memref<1x128xf32, #tpu.memory_space<vmem>>, %arg8: memref<8x4xf32, #tpu.memory_space<vmem>>) attributes {dimension_semantics = [#tpu.dimension_semantics<parallel>], iteration_bounds = array<i64: 1>, scalar_prefetch = 0 : i64, scratch_operands = 0 : i64, tpu.core_type = #tpu.core_type<tc>, window_params = [{transform_indices = @transform_0, window_bounds = array<i64: 8, 40>}, {pipeline_mode = #tpu.pipeline_mode<synchronous>, transform_indices = @transform_1, window_bounds = array<i64: 40, 128>}, {pipeline_mode = #tpu.pipeline_mode<synchronous>, transform_indices = @transform_2, window_bounds = array<i64: 1, 128>}, {pipeline_mode = #tpu.pipeline_mode<synchronous>, transform_indices = @transform_3, window_bounds = array<i64: 128, 128>}, {pipeline_mode = #tpu.pipeline_mode<synchronous>, transform_indices = @transform_4, window_bounds = array<i64: 1, 128>}, {pipeline_mode = #tpu.pipeline_mode<synchronous>, transform_indices = @transform_5, window_bounds = array<i64: 128, 128>}, {pipeline_mode = #tpu.pipeline_mode<synchronous>, transform_indices = @transform_6, window_bounds = array<i64: 1, 128>}, {transform_indices = @transform_7, window_bounds = array<i64: 8, 4>}]} {
    %c0 = arith.constant 0 : index
    %c0_0 = arith.constant 0 : index
    %0 = vector.load %arg1[%c0, %c0_0] : memref<8x40xf32, #tpu.memory_space<vmem>>, vector<8x40xf32>
    %c0_1 = arith.constant 0 : index
    %c0_2 = arith.constant 0 : index
    %1 = vector.load %arg2[%c0_1, %c0_2] : memref<40x128xf32, #tpu.memory_space<vmem>>, vector<40x128xf32>
    %cst = arith.constant dense<0.000000e+00> : vector<8x128xf32>
    %2 = tpu.matmul %0, %1, %cst {dimension_numbers = #tpu.dot_dimension_numbers<[1], [0], [0], [1], [0, 0, 1, 1], [], []>} : vector<8x40xf32>, vector<40x128xf32>, vector<8x128xf32> -> vector<8x128xf32>
    %c0_3 = arith.constant 0 : index
    %c0_4 = arith.constant 0 : index
    %3 = vector.load %arg3[%c0_3, %c0_4] : memref<1x128xf32, #tpu.memory_space<vmem>>, vector<1x128xf32>
    %4 = vector.broadcast %3 : vector<1x128xf32> to vector<8x128xf32>
    %5 = arith.addf %2, %4 : vector<8x128xf32>
    %6 = arith.negf %5 : vector<8x128xf32>
    %7 = math.exp %6 : vector<8x128xf32>
    %cst_5 = arith.constant 1.000000e+00 : f32
    %8 = vector.broadcast %cst_5 : f32 to vector<8x128xf32>
    %9 = arith.addf %8, %7 : vector<8x128xf32>
    %10 = arith.divf %8, %9 : vector<8x128xf32>
    %c0_6 = arith.constant 0 : index
    %c0_7 = arith.constant 0 : index
    %11 = vector.load %arg4[%c0_6, %c0_7] : memref<128x128xf32, #tpu.memory_space<vmem>>, vector<128x128xf32>
    %cst_8 = arith.constant dense<0.000000e+00> : vector<8x128xf32>
    %12 = tpu.matmul %10, %11, %cst_8 {dimension_numbers = #tpu.dot_dimension_numbers<[1], [0], [0], [1], [0, 0, 1, 1], [], []>} : vector<8x128xf32>, vector<128x128xf32>, vector<8x128xf32> -> vector<8x128xf32>
    %c0_9 = arith.constant 0 : index
    %c0_10 = arith.constant 0 : index
    %13 = vector.load %arg5[%c0_9, %c0_10] : memref<1x128xf32, #tpu.memory_space<vmem>>, vector<1x128xf32>
    %14 = vector.broadcast %13 : vector<1x128xf32> to vector<8x128xf32>
    %15 = arith.addf %12, %14 : vector<8x128xf32>
    %16 = arith.negf %15 : vector<8x128xf32>
    %17 = math.exp %16 : vector<8x128xf32>
    %cst_11 = arith.constant 1.000000e+00 : f32
    %18 = vector.broadcast %cst_11 : f32 to vector<8x128xf32>
    %19 = arith.addf %18, %17 : vector<8x128xf32>
    %20 = arith.divf %18, %19 : vector<8x128xf32>
    %c0_12 = arith.constant 0 : index
    %c0_13 = arith.constant 0 : index
    %21 = vector.load %arg6[%c0_12, %c0_13] : memref<128x128xf32, #tpu.memory_space<vmem>>, vector<128x128xf32>
    %cst_14 = arith.constant dense<0.000000e+00> : vector<8x128xf32>
    %22 = tpu.matmul %20, %21, %cst_14 {dimension_numbers = #tpu.dot_dimension_numbers<[1], [0], [0], [1], [0, 0, 1, 1], [], []>} : vector<8x128xf32>, vector<128x128xf32>, vector<8x128xf32> -> vector<8x128xf32>
    %c0_15 = arith.constant 0 : index
    %c0_16 = arith.constant 0 : index
    %23 = vector.load %arg7[%c0_15, %c0_16] : memref<1x128xf32, #tpu.memory_space<vmem>>, vector<1x128xf32>
    %24 = vector.broadcast %23 : vector<1x128xf32> to vector<8x128xf32>
    %25 = arith.addf %22, %24 : vector<8x128xf32>
    %26 = vector.extract_strided_slice %25 {offsets = [0, 0], sizes = [8, 4], strides = [1, 1]} : vector<8x128xf32> to vector<8x4xf32>
    %c0_17 = arith.constant 0 : index
    %c0_18 = arith.constant 0 : index
    %27 = vector.load %arg8[%c0_17, %c0_18] : memref<8x4xf32, #tpu.memory_space<vmem>>, vector<8x4xf32>
    tpu.vector_store %arg8[%c0_17, %c0_18], %26 {strides = array<i32>} : memref<8x4xf32, #tpu.memory_space<vmem>>, vector<8x4xf32>,
    return
  }
  func.func @transform_0(%arg0: i32) -> (i32, i32) {
    %c0_i32 = arith.constant 0 : i32
    %c0_i32_0 = arith.constant 0 : i32
    return %arg0, %c0_i32 : i32, i32
  }
  func.func @transform_1(%arg0: i32) -> (i32, i32) {
    %c0_i32 = arith.constant 0 : i32
    %c0_i32_0 = arith.constant 0 : i32
    %c0_i32_1 = arith.constant 0 : i32
    return %c0_i32, %c0_i32_0 : i32, i32
  }
  func.func @transform_2(%arg0: i32) -> (i32, i32) {
    %c0_i32 = arith.constant 0 : i32
    %c0_i32_0 = arith.constant 0 : i32
    %c0_i32_1 = arith.constant 0 : i32
    return %c0_i32, %c0_i32_0 : i32, i32
  }
  func.func @transform_3(%arg0: i32) -> (i32, i32) {
    %c0_i32 = arith.constant 0 : i32
    %c0_i32_0 = arith.constant 0 : i32
    %c0_i32_1 = arith.constant 0 : i32
    return %c0_i32, %c0_i32_0 : i32, i32
  }
  func.func @transform_4(%arg0: i32) -> (i32, i32) {
    %c0_i32 = arith.constant 0 : i32
    %c0_i32_0 = arith.constant 0 : i32
    %c0_i32_1 = arith.constant 0 : i32
    return %c0_i32, %c0_i32_0 : i32, i32
  }
  func.func @transform_5(%arg0: i32) -> (i32, i32) {
    %c0_i32 = arith.constant 0 : i32
    %c0_i32_0 = arith.constant 0 : i32
    %c0_i32_1 = arith.constant 0 : i32
    return %c0_i32, %c0_i32_0 : i32, i32
  }
  func.func @transform_6(%arg0: i32) -> (i32, i32) {
    %c0_i32 = arith.constant 0 : i32
    %c0_i32_0 = arith.constant 0 : i32
    %c0_i32_1 = arith.constant 0 : i32
    return %c0_i32, %c0_i32_0 : i32, i32
  }
  func.func @transform_7(%arg0: i32) -> (i32, i32) {
    %c0_i32 = arith.constant 0 : i32
    %c0_i32_0 = arith.constant 0 : i32
    return %arg0, %c0_i32 : i32, i32
  }
}

</mosaic_0001>

<llo_original>
// kernel: tpu_custom_call.1
$region0: #{tpu_custom_call.1}
  #allocation0 [shape = 'u32[]', space=smem, size = 0x4, offset = 0x4, fixed_abs, tag = 'smem constant byte address 0x4 - core index']
  #allocation1 [shape = 'u32[144,128]{1,0:T(1,128)}', space=vmem, size = 0x12000, scoped, tag = 'internal scratch']
  %s0 = inlined_call_operand.hbm [shape: f32[8,40], index: 0, kind: input, shape index: {}]
  %s1 = inlined_call_operand.hbm [shape: f32[40,128], index: 1, kind: input, shape index: {}]
  %s2 = inlined_call_operand.vmem [shape: f32[1,128], index: 2, kind: input, shape index: {}]
  %s3 = inlined_call_operand.hbm [shape: f32[128,128], index: 3, kind: input, shape index: {}]
  %s4 = inlined_call_operand.vmem [shape: f32[1,128], index: 4, kind: input, shape index: {}]
  %s5 = inlined_call_operand.hbm [shape: f32[128,128], index: 5, kind: input, shape index: {}]
  %s6 = inlined_call_operand.vmem [shape: f32[1,128], index: 6, kind: input, shape index: {}]
  %s7 = inlined_call_operand.vmem [shape: f32[8,4], index: 7, kind: output, shape index: {}]
  %s8 = sld [smem:[#allocation0]]
  $region54: #{tpu_custom_call.1} parent=0
    _
  %s10 = ssub.s32 1, %s8
  %s11 = scalar_select 0, %s10, %s8
  $region1: #{tpu_custom_call.1} parent=0
    #allocation2 [shape = 'u8[4096]{0}', space=vmem, size = 0x1000, scoped, tag = 'input window, operand 0, single buffered']
    #allocation3 [shape = 's32[1]{0}', space=sflag, size = 0x4, scoped, tag = 'scoped memory for tpu_custom_call.1']
    #allocation4 [shape = 'u8[20480]{0}', space=vmem, size = 0x5000, scoped, tag = 'input window, operand 1, single buffered']
    #allocation5 [shape = 's32[1]{0}', space=sflag, size = 0x4, scoped, tag = 'scoped memory for tpu_custom_call.1']
    #allocation6 [shape = 'u8[65536]{0}', space=vmem, size = 0x10000, scoped, tag = 'input window, operand 3, single buffered']
    #allocation7 [shape = 'u8[65536]{0}', space=vmem, size = 0x10000, scoped, tag = 'input window, operand 5, single buffered']
    #allocation8 [shape = 's32[1]{0}', space=sflag, size = 0x4, scoped, tag = 'scoped memory for tpu_custom_call.1']
    %12 = vsyncpa [#allocation3], 0
    %13 = vsyncpa [#allocation5], 0
    %14 = vsyncpa [#allocation8], 0
    // Predicated region
    $region2: #{tpu_custom_call.1} parent=1 // pred_check
      _
    $region3: #{tpu_custom_call.1} parent=1 // pred_check_branch
      %16 = sbr.rel (0) target = $region5
    $region4: #{tpu_custom_call.1} parent=1 // pred_region
      %s18 = ssub.s32 128, 128
      %19 = vsyncadd [#allocation3], %s18
      %s21 = sshll.u32 [#allocation2], 4
      %s22 = int_to_ptr.vmem [resolvable:$true] %s21
      %24 = dma.hbm_to_vmem [thread:$0]  %s0, 128, %s22, [#allocation3]
    $region5: #{tpu_custom_call.1} parent=1 // pred_fallthru
      _
    // Predicated region
    $region6: #{tpu_custom_call.1} parent=1 // pred_check
      _
    $region7: #{tpu_custom_call.1} parent=1 // pred_check_branch
      %26 = sbr.rel (0) target = $region9
    $region8: #{tpu_custom_call.1} parent=1 // pred_region
      %s28 = ssub.s32 640, 640
      %29 = vsyncadd [#allocation5], %s28
      %s30 = sshll.u32 [#allocation4], 4
      %s31 = int_to_ptr.vmem [resolvable:$true] %s30
      %36 = dma.hbm_to_vmem [thread:$0]  %s1, 640, %s31, [#allocation5], 128, 128, 8
    $region9: #{tpu_custom_call.1} parent=1 // pred_fallthru
      _
    // Predicated region
    $region10: #{tpu_custom_call.1} parent=1 // pred_check
      _
    $region11: #{tpu_custom_call.1} parent=1 // pred_check_branch
      %38 = sbr.rel (0) target = $region13
    $region12: #{tpu_custom_call.1} parent=1 // pred_region
      _
    $region13: #{tpu_custom_call.1} parent=1 // pred_fallthru
      _
    // Predicated region
    $region14: #{tpu_custom_call.1} parent=1 // pred_check
      _
    $region15: #{tpu_custom_call.1} parent=1 // pred_check_branch
      %40 = sbr.rel (0) target = $region17
    $region16: #{tpu_custom_call.1} parent=1 // pred_region
      %s42 = ssub.s32 2048, 2048
      %43 = vsyncadd [#allocation5], %s42
      %s44 = sshll.u32 [#allocation6], 4
      %s45 = int_to_ptr.vmem [resolvable:$true] %s44
      %50 = dma.hbm_to_vmem [thread:$0]  %s3, 2048, %s45, [#allocation5], 128, 128, 8
    $region17: #{tpu_custom_call.1} parent=1 // pred_fallthru
      _
    // Predicated region
    $region18: #{tpu_custom_call.1} parent=1 // pred_check
      _
    $region19: #{tpu_custom_call.1} parent=1 // pred_check_branch
      %52 = sbr.rel (0) target = $region21
    $region20: #{tpu_custom_call.1} parent=1 // pred_region
      _
    $region21: #{tpu_custom_call.1} parent=1 // pred_fallthru
      _
    // Predicated region
    $region22: #{tpu_custom_call.1} parent=1 // pred_check
      _
    $region23: #{tpu_custom_call.1} parent=1 // pred_check_branch
      %54 = sbr.rel (0) target = $region25
    $region24: #{tpu_custom_call.1} parent=1 // pred_region
      %s56 = ssub.s32 2048, 2048
      %57 = vsyncadd [#allocation8], %s56
      %s58 = sshll.u32 [#allocation7], 4
      %s59 = int_to_ptr.vmem [resolvable:$true] %s58
      %64 = dma.hbm_to_vmem [thread:$0]  %s5, 2048, %s59, [#allocation8], 128, 128, 8
    $region25: #{tpu_custom_call.1} parent=1 // pred_fallthru
      _
    // Predicated region
    $region26: #{tpu_custom_call.1} parent=1 // pred_check
      _
    $region27: #{tpu_custom_call.1} parent=1 // pred_check_branch
      %66 = sbr.rel (0) target = $region29
    $region28: #{tpu_custom_call.1} parent=1 // pred_region
      _
    $region29: #{tpu_custom_call.1} parent=1 // pred_fallthru
      _
    // Predicated region
    $region30: #{tpu_custom_call.1} parent=1 // pred_check
      _
    $region31: #{tpu_custom_call.1} parent=1 // pred_check_branch
      %68 = sbr.rel (0) target = $region33
    $region32: #{tpu_custom_call.1} parent=1 // pred_region
      %69 = dma.done [#allocation3], 128
    $region33: #{tpu_custom_call.1} parent=1 // pred_fallthru
      _
    // Predicated region
    $region34: #{tpu_custom_call.1} parent=1 // pred_check
      _
    $region35: #{tpu_custom_call.1} parent=1 // pred_check_branch
      %71 = sbr.rel (0) target = $region37
    $region36: #{tpu_custom_call.1} parent=1 // pred_region
      %72 = dma.done [#allocation5], 640
    $region37: #{tpu_custom_call.1} parent=1 // pred_fallthru
      _
    // Predicated region
    $region38: #{tpu_custom_call.1} parent=1 // pred_check
      _
    $region39: #{tpu_custom_call.1} parent=1 // pred_check_branch
      %74 = sbr.rel (0) target = $region41
    $region40: #{tpu_custom_call.1} parent=1 // pred_region
      %75 = dma.done [#allocation5], 2048
    $region41: #{tpu_custom_call.1} parent=1 // pred_fallthru
      _
    // Predicated region
    $region42: #{tpu_custom_call.1} parent=1 // pred_check
      _
    $region43: #{tpu_custom_call.1} parent=1 // pred_check_branch
      %77 = sbr.rel (0) target = $region45
    $region44: #{tpu_custom_call.1} parent=1 // pred_region
      %78 = dma.done [#allocation8], 2048
    $region45: #{tpu_custom_call.1} parent=1 // pred_fallthru
      _
    %v79 = vld [vmem:[#allocation2] sm:$0xff]
    %v80 = vld [vmem:[#allocation4] sm:$0xff]
    %v81 = vld [vmem:[#allocation4 + $0x8] sm:$0xff]
    %v82 = vld [vmem:[#allocation4 + $0x10] sm:$0xff]
    %v83 = vld [vmem:[#allocation4 + $0x18] sm:$0xff]
    %v84 = vld [vmem:[#allocation4 + $0x20] sm:$0xff]
    %v85 = vld [vmem:[%s2] sm:$0x1]
    %v87 = vlaneseq
    %v88 = vshrl.u32 %v87, 7
    %v89 = vsub.s32 0, %v88
    %v90 = vrot.slane %v85, %v89
    %vm92 = vcmask 326656
    %v94 = vsel %vm92, %v79, 0
    %96 = vmatprep.subr.mxu0 0.0
    %97 = vmatpush1.msra.mxu0 %v80
    %98 = vmatprep.subr.mxu0 0.0
    %99 = vmatpush1.msra.mxu0 %v81
    %100 = vmatprep.subr.mxu0 0.0
    %101 = vmatpush1.msra.mxu0 %v82
    %102 = vmatprep.subr.mxu0 0.0
    %103 = vmatpush1.msra.mxu0 %v83
    %104 = vmatprep.subr.mxu0 0.0
    %105 = vmatpush1.msra.mxu0 %v84
    %106 = vmatprep.subr.mxu0 0.0
    %107 = vmatpush1.msra.mxu0 0.0
    %108 = vmatprep.subr.mxu0 0.0
    %109 = vmatpush1.msra.mxu0 0.0
    %110 = vmatprep.subr.mxu0 0.0
    %111 = vmatpush1.msra.mxu0 0.0
    %112 = vmatprep.subr.mxu0 0.0
    %113 = vmatpush1.msra.mxu0 0.0
    %114 = vmatprep.subr.mxu0 0.0
    %115 = vmatpush1.msra.mxu0 0.0
    %116 = vmatprep.subr.mxu0 0.0
    %117 = vmatpush1.msra.mxu0 0.0
    %118 = vmatprep.subr.mxu0 0.0
    %119 = vmatpush1.msra.mxu0 0.0
    %120 = vmatprep.subr.mxu0 0.0
    %121 = vmatpush1.msra.mxu0 0.0
    %122 = vmatprep.subr.mxu0 0.0
    %123 = vmatpush1.msra.mxu0 0.0
    %124 = vmatprep.subr.mxu0 0.0
    %125 = vmatpush1.msra.mxu0 0.0
    %126 = vmatprep.subr.mxu0 0.0
    %127 = vmatpush1.msra.mxu0 0.0
    %128 = vmatprep.subr.mxu0 0.0
    %129 = vmatpush1.msra.mxu0 0.0
    %130 = vmatprep.subr.mxu0 0.0
    %131 = vmatpush1.msra.mxu0 0.0
    %132 = vmatprep.subr.mxu0 0.0
    %133 = vmatpush1.msra.mxu0 0.0
    %134 = vmatprep.subr.mxu0 0.0
    %135 = vmatpush1.msra.mxu0 0.0
    %136 = vmatprep.subr.mxu0 0.0
    %137 = vmatpush1.msra.mxu0 0.0
    %138 = vmatprep.subr.mxu0 0.0
    %139 = vmatpush1.msra.mxu0 0.0
    %140 = vmatprep.subr.mxu0 0.0
    %141 = vmatpush1.msra.mxu0 0.0
    %142 = vmatprep.subr.mxu0 0.0
    %143 = vmatpush1.msra.mxu0 0.0
    %144 = vmatprep.subr.mxu0 0.0
    %145 = vmatpush1.msra.mxu0 0.0
    %146 = vmatprep.subr.mxu0 0.0
    %147 = vmatpush1.msra.mxu0 0.0
    %148 = vmatprep.subr.mxu0 0.0
    %149 = vmatpush1.msra.mxu0 0.0
    %150 = vmatprep.subr.mxu0 0.0
    %151 = vmatpush1.msra.mxu0 0.0
    %152 = vmatprep.subr.mxu0 0.0
    %153 = vmatpush1.msra.mxu0 0.0
    %154 = vmatprep.subr.mxu0 0.0
    %155 = vmatpush1.msra.mxu0 0.0
    %156 = vmatprep.subr.mxu0 0.0
    %157 = vmatpush1.msra.mxu0 0.0
    %158 = vmatprep.subr.mxu0 0.0
    %159 = vmatpush1.msra.mxu0 0.0
    %160 = vmatprep.mubr.f32.mxu0 0.0
    %161 = vmatmul.mubr.f32.gmra.mrb[0].mxu0 %v94
    %v162 = vpop.f32.mrb[0].mxu0
    %v163 = vadd.f32 %v90, %v162
    %v164 = vpop.f32.mrb[0].mxu0
    %165 = vdwg.mxu0
    %v166 = vxor.u32 %v163, 2147483648
    %v167 = vmul.f32 %v166, 1.442695
    %v168 = vpow.pop %v167
    %v169 = vadd.f32 %v168, 1.0
    %v170 = vrcp.pop %v169
    %v171 = vmul.f32 1.0, %v170
    %v172 = vld [vmem:[#allocation6] sm:$0xff]
    %v173 = vld [vmem:[#allocation6 + $0x8] sm:$0xff]
    %v174 = vld [vmem:[#allocation6 + $0x10] sm:$0xff]
    %v175 = vld [vmem:[#allocation6 + $0x18] sm:$0xff]
    %v176 = vld [vmem:[#allocation6 + $0x20] sm:$0xff]
    %v177 = vld [vmem:[#allocation6 + $0x28] sm:$0xff]
    %v178 = vld [vmem:[#allocation6 + $0x30] sm:$0xff]
    %v179 = vld [vmem:[#allocation6 + $0x38] sm:$0xff]
    %v180 = vld [vmem:[#allocation6 + $0x40] sm:$0xff]
    %v181 = vld [vmem:[#allocation6 + $0x48] sm:$0xff]
    %v182 = vld [vmem:[#allocation6 + $0x50] sm:$0xff]
    %v183 = vld [vmem:[#allocation6 + $0x58] sm:$0xff]
    %v184 = vld [vmem:[#allocation6 + $0x60] sm:$0xff]
    %v185 = vld [vmem:[#allocation6 + $0x68] sm:$0xff]
    %v186 = vld [vmem:[#allocation6 + $0x70] sm:$0xff]
    %v187 = vld [vmem:[#allocation6 + $0x78] sm:$0xff]
    %v188 = vld [vmem:[%s4] sm:$0x1]
    %v190 = vlaneseq
    %v191 = vshrl.u32 %v190, 7
    %v192 = vsub.s32 0, %v191
    %v193 = vrot.slane %v188, %v192
    %195 = vmatprep.subr.mxu0 0.0
    %196 = vmatpush1.msra.mxu0 %v172
    %197 = vmatprep.subr.mxu0 0.0
    %198 = vmatpush1.msra.mxu0 %v173
    %199 = vmatprep.subr.mxu0 0.0
    %200 = vmatpush1.msra.mxu0 %v174
    %201 = vmatprep.subr.mxu0 0.0
    %202 = vmatpush1.msra.mxu0 %v175
    %203 = vmatprep.subr.mxu0 0.0
    %204 = vmatpush1.msra.mxu0 %v176
    %205 = vmatprep.subr.mxu0 0.0
    %206 = vmatpush1.msra.mxu0 %v177
    %207 = vmatprep.subr.mxu0 0.0
    %208 = vmatpush1.msra.mxu0 %v178
    %209 = vmatprep.subr.mxu0 0.0
    %210 = vmatpush1.msra.mxu0 %v179
    %211 = vmatprep.subr.mxu0 0.0
    %212 = vmatpush1.msra.mxu0 %v180
    %213 = vmatprep.subr.mxu0 0.0
    %214 = vmatpush1.msra.mxu0 %v181
    %215 = vmatprep.subr.mxu0 0.0
    %216 = vmatpush1.msra.mxu0 %v182
    %217 = vmatprep.subr.mxu0 0.0
    %218 = vmatpush1.msra.mxu0 %v183
    %219 = vmatprep.subr.mxu0 0.0
    %220 = vmatpush1.msra.mxu0 %v184
    %221 = vmatprep.subr.mxu0 0.0
    %222 = vmatpush1.msra.mxu0 %v185
    %223 = vmatprep.subr.mxu0 0.0
    %224 = vmatpush1.msra.mxu0 %v186
    %225 = vmatprep.subr.mxu0 0.0
    %226 = vmatpush1.msra.mxu0 %v187
    %227 = vmatprep.subr.mxu0 0.0
    %228 = vmatpush1.msra.mxu0 0.0
    %229 = vmatprep.subr.mxu0 0.0
    %230 = vmatpush1.msra.mxu0 0.0
    %231 = vmatprep.subr.mxu0 0.0
    %232 = vmatpush1.msra.mxu0 0.0
    %233 = vmatprep.subr.mxu0 0.0
    %234 = vmatpush1.msra.mxu0 0.0
    %235 = vmatprep.subr.mxu0 0.0
    %236 = vmatpush1.msra.mxu0 0.0
    %237 = vmatprep.subr.mxu0 0.0
    %238 = vmatpush1.msra.mxu0 0.0
    %239 = vmatprep.subr.mxu0 0.0
    %240 = vmatpush1.msra.mxu0 0.0
    %241 = vmatprep.subr.mxu0 0.0
    %242 = vmatpush1.msra.mxu0 0.0
    %243 = vmatprep.subr.mxu0 0.0
    %244 = vmatpush1.msra.mxu0 0.0
    %245 = vmatprep.subr.mxu0 0.0
    %246 = vmatpush1.msra.mxu0 0.0
    %247 = vmatprep.subr.mxu0 0.0
    %248 = vmatpush1.msra.mxu0 0.0
    %249 = vmatprep.subr.mxu0 0.0
    %250 = vmatpush1.msra.mxu0 0.0
    %251 = vmatprep.subr.mxu0 0.0
    %252 = vmatpush1.msra.mxu0 0.0
    %253 = vmatprep.subr.mxu0 0.0
    %254 = vmatpush1.msra.mxu0 0.0
    %255 = vmatprep.subr.mxu0 0.0
    %256 = vmatpush1.msra.mxu0 0.0
    %257 = vmatprep.subr.mxu0 0.0
    %258 = vmatpush1.msra.mxu0 0.0
    %259 = vmatprep.mubr.f32.mxu0 0.0
    %260 = vmatmul.mubr.f32.gmra.mrb[0].mxu0 %v171
    %v261 = vpop.f32.mrb[0].mxu0
    %v262 = vadd.f32 %v193, %v261
    %v263 = vpop.f32.mrb[0].mxu0
    %264 = vdwg.mxu0
    %v265 = vxor.u32 %v262, 2147483648
    %v266 = vmul.f32 %v265, 1.442695
    %v267 = vpow.pop %v266
    %v268 = vadd.f32 %v267, 1.0
    %v269 = vrcp.pop %v268
    %v270 = vmul.f32 1.0, %v269
    %v271 = vld [vmem:[#allocation7] sm:$0xff]
    %v272 = vld [vmem:[#allocation7 + $0x8] sm:$0xff]
    %v273 = vld [vmem:[#allocation7 + $0x10] sm:$0xff]
    %v274 = vld [vmem:[#allocation7 + $0x18] sm:$0xff]
    %v275 = vld [vmem:[#allocation7 + $0x20] sm:$0xff]
    %v276 = vld [vmem:[#allocation7 + $0x28] sm:$0xff]
    %v277 = vld [vmem:[#allocation7 + $0x30] sm:$0xff]
    %v278 = vld [vmem:[#allocation7 + $0x38] sm:$0xff]
    %v279 = vld [vmem:[#allocation7 + $0x40] sm:$0xff]
    %v280 = vld [vmem:[#allocation7 + $0x48] sm:$0xff]
    %v281 = vld [vmem:[#allocation7 + $0x50] sm:$0xff]
    %v282 = vld [vmem:[#allocation7 + $0x58] sm:$0xff]
    %v283 = vld [vmem:[#allocation7 + $0x60] sm:$0xff]
    %v284 = vld [vmem:[#allocation7 + $0x68] sm:$0xff]
    %v285 = vld [vmem:[#allocation7 + $0x70] sm:$0xff]
    %v286 = vld [vmem:[#allocation7 + $0x78] sm:$0xff]
    %v287 = vld [vmem:[%s6] sm:$0x1]
    %v289 = vlaneseq
    %v290 = vshrl.u32 %v289, 7
    %v291 = vsub.s32 0, %v290
    %v292 = vrot.slane %v287, %v291
    %294 = vmatprep.subr.mxu0 0.0
    %295 = vmatpush1.msra.mxu0 %v271
    %296 = vmatprep.subr.mxu0 0.0
    %297 = vmatpush1.msra.mxu0 %v272
    %298 = vmatprep.subr.mxu0 0.0
    %299 = vmatpush1.msra.mxu0 %v273
    %300 = vmatprep.subr.mxu0 0.0
    %301 = vmatpush1.msra.mxu0 %v274
    %302 = vmatprep.subr.mxu0 0.0
    %303 = vmatpush1.msra.mxu0 %v275
    %304 = vmatprep.subr.mxu0 0.0
    %305 = vmatpush1.msra.mxu0 %v276
    %306 = vmatprep.subr.mxu0 0.0
    %307 = vmatpush1.msra.mxu0 %v277
    %308 = vmatprep.subr.mxu0 0.0
    %309 = vmatpush1.msra.mxu0 %v278
    %310 = vmatprep.subr.mxu0 0.0
    %311 = vmatpush1.msra.mxu0 %v279
    %312 = vmatprep.subr.mxu0 0.0
    %313 = vmatpush1.msra.mxu0 %v280
    %314 = vmatprep.subr.mxu0 0.0
    %315 = vmatpush1.msra.mxu0 %v281
    %316 = vmatprep.subr.mxu0 0.0
    %317 = vmatpush1.msra.mxu0 %v282
    %318 = vmatprep.subr.mxu0 0.0
    %319 = vmatpush1.msra.mxu0 %v283
    %320 = vmatprep.subr.mxu0 0.0
    %321 = vmatpush1.msra.mxu0 %v284
    %322 = vmatprep.subr.mxu0 0.0
    %323 = vmatpush1.msra.mxu0 %v285
    %324 = vmatprep.subr.mxu0 0.0
    %325 = vmatpush1.msra.mxu0 %v286
    %326 = vmatprep.subr.mxu0 0.0
    %327 = vmatpush1.msra.mxu0 0.0
    %328 = vmatprep.subr.mxu0 0.0
    %329 = vmatpush1.msra.mxu0 0.0
    %330 = vmatprep.subr.mxu0 0.0
    %331 = vmatpush1.msra.mxu0 0.0
    %332 = vmatprep.subr.mxu0 0.0
    %333 = vmatpush1.msra.mxu0 0.0
    %334 = vmatprep.subr.mxu0 0.0
    %335 = vmatpush1.msra.mxu0 0.0
    %336 = vmatprep.subr.mxu0 0.0
    %337 = vmatpush1.msra.mxu0 0.0
    %338 = vmatprep.subr.mxu0 0.0
    %339 = vmatpush1.msra.mxu0 0.0
    %340 = vmatprep.subr.mxu0 0.0
    %341 = vmatpush1.msra.mxu0 0.0
    %342 = vmatprep.subr.mxu0 0.0
    %343 = vmatpush1.msra.mxu0 0.0
    %344 = vmatprep.subr.mxu0 0.0
    %345 = vmatpush1.msra.mxu0 0.0
    %346 = vmatprep.subr.mxu0 0.0
    %347 = vmatpush1.msra.mxu0 0.0
    %348 = vmatprep.subr.mxu0 0.0
    %349 = vmatpush1.msra.mxu0 0.0
    %350 = vmatprep.subr.mxu0 0.0
    %351 = vmatpush1.msra.mxu0 0.0
    %352 = vmatprep.subr.mxu0 0.0
    %353 = vmatpush1.msra.mxu0 0.0
    %354 = vmatprep.subr.mxu0 0.0
    %355 = vmatpush1.msra.mxu0 0.0
    %356 = vmatprep.subr.mxu0 0.0
    %357 = vmatpush1.msra.mxu0 0.0
    %358 = vmatprep.mubr.f32.mxu0 0.0
    %359 = vmatmul.mubr.f32.gmra.mrb[0].mxu0 %v270
    %v360 = vpop.f32.mrb[0].mxu0
    %v361 = vadd.f32 %v292, %v360
    %v362 = vpop.f32.mrb[0].mxu0
    %363 = vdwg.mxu0
    %vm364 = vcmask 31744
    %365 = vst.msk [vmem:[%s7] sm:$0xff] %vm364, %v361
    // Predicated region
    $region46: #{tpu_custom_call.1} parent=1 // pred_check
      _
    $region47: #{tpu_custom_call.1} parent=1 // pred_check_branch
      %367 = sbr.rel (0) target = $region49
    $region48: #{tpu_custom_call.1} parent=1 // pred_region
      _
    $region49: #{tpu_custom_call.1} parent=1 // pred_fallthru
      _
    // Predicated region
    $region50: #{tpu_custom_call.1} parent=1 // pred_check
      _
    $region51: #{tpu_custom_call.1} parent=1 // pred_check_branch
      %369 = sbr.rel (0) target = $region53
    $region52: #{tpu_custom_call.1} parent=1 // pred_region
      _
    $region53: #{tpu_custom_call.1} parent=1 // pred_fallthru
      _
    %370 = vsyncpa [#allocation3], 1
    %371 = vsyncpa [#allocation5], 1
    %372 = vsyncpa [#allocation8], 1

</llo_original>
